<compile_context>
chip_gen: v5e
topology: v5e:2x2
jax: 0.10.0
libtpu: 0.0.40
codegen_flags: <defaults>
</compile_context>

<pallas_src>
import numpy as np
import jax
import jax.numpy as jnp
from jax import lax
from jax.experimental import pallas as pl
from jax.experimental.pallas import tpu as pltpu

EPS = 1e-5
COMPUTE_DTYPE = jnp.bfloat16   # MXU operand dtype (accumulation is always f32)
TARGET_LANES = 2048            # desired lane width of the per-step activation slab


def _make_tap_masks(h: int, w: int, b_tile: int) -> jnp.ndarray:
    """(9, b_tile*H*W) f32 validity masks for the 3x3 taps with zero padding=1.

    The masks also zero every tap that a lane roll would pull across an image
    boundary inside the batched slab (or across the slab wrap-around), so the
    roll-based depthwise below is exact for any batch tiling.
    """
    ys, xs = np.meshgrid(np.arange(h), np.arange(w), indexing="ij")
    m = np.zeros((9, h * w), np.float32)
    for dh in (-1, 0, 1):
        for dw in (-1, 0, 1):
            k = (dh + 1) * 3 + (dw + 1)
            valid = (ys + dh >= 0) & (ys + dh < h) & (xs + dw >= 0) & (xs + dw < w)
            m[k] = valid.reshape(-1).astype(np.float32)
    return jnp.asarray(np.tile(m, (1, b_tile)))


def _make_stride2_selector(h: int, w: int, b_tile: int, dtype) -> jnp.ndarray:
    """(b_tile*H*W, b_tile*(H//2)*(W//2)) 0/1 matrix selecting even (y, x) columns."""
    hw = h * w
    ho, wo = h // 2, w // 2
    sel = np.zeros((b_tile * hw, b_tile * ho * wo), np.float32)
    for b in range(b_tile):
        for yo in range(ho):
            for xo in range(wo):
                row = b * hw + (2 * yo) * w + 2 * xo
                col = (b * ho + yo) * wo + xo
                sel[row, col] = 1.0
    return jnp.asarray(sel).astype(dtype)


def _make_fused_kernel(w: int, use_skip: bool, use_conv1x1: bool,
                       subsample: bool, cdt):
    def kernel(*refs):
        it = iter(refs)
        x_ref = next(it)
        m_ref = next(it)
        w1_ref = next(it); b1_ref = next(it)
        w2_ref = next(it); b2_ref = next(it)
        w3_ref = next(it); b3_ref = next(it)
        s_ref = next(it) if (use_skip and use_conv1x1) else None
        sel_ref = next(it) if subsample else None
        o_ref = next(it)

        x = x_ref[0]                                            # (in_c, L) f32
        lanes = x.shape[1]                                      # static

        # ---- 1x1 expand + folded BN1 + ReLU6 (MXU, lane-dense) ----
        h1 = jnp.dot(w1_ref[...], x.astype(cdt),
                     preferred_element_type=jnp.float32)        # (ex_c, L)
        h1 = jnp.clip(h1 + b1_ref[...], 0.0, 6.0)

        # ---- depthwise 3x3: center tap + 8 masked lane rolls (XLU + VPU) ----
        acc = h1 * w2_ref[:, 4:5]                               # center tap
        for dh in (-1, 0, 1):
            for dw in (-1, 0, 1):
                if dh == 0 and dw == 0:
                    continue
                k = (dh + 1) * 3 + (dw + 1)
                d = dh * w + dw                                  # lane offset of tap
                shifted = pltpu.roll(h1, shift=(-d) % lanes, axis=1)
                acc = acc + (shifted * m_ref[k:k + 1, :]) * w2_ref[:, k:k + 1]
        h2 = jnp.clip(acc + b2_ref[...], 0.0, 6.0)               # (ex_c, L)

        # ---- optional in-kernel stride-2 subsample (exact 0/1 MXU gather) ----
        h2c = h2.astype(cdt)
        if subsample:
            h2c = jnp.dot(h2c, sel_ref[...],
                          preferred_element_type=jnp.float32).astype(cdt)

        # ---- 1x1 project + folded BN3 (MXU) ----
        out = jnp.dot(w3_ref[...], h2c, preferred_element_type=jnp.float32)
        out = out + b3_ref[...]

        # ---- residual (stride == 1 only) ----
        if use_skip:
            if use_conv1x1:
                out = out + jnp.dot(s_ref[...], x.astype(cdt),
                                    preferred_element_type=jnp.float32)
            else:
                out = out + x                                    # in_c == out_c

        o_ref[0] = out.astype(o_ref.dtype)

    return kernel


def _fold_bn(wmat, bn):
    """Fold inference-mode BatchNorm into a bias-free conv weight matrix."""
    scale = bn["gamma"] / jnp.sqrt(bn["var"] + EPS)
    shift = bn["beta"] - bn["mean"] * scale
    return wmat * scale[:, None], shift[:, None]


def _pick_batch_tile(n: int, hw: int, hw_out: int,
                     target_lanes: int = TARGET_LANES) -> int:
    divisors = [d for d in range(1, n + 1) if n % d == 0]
    cap = max(1, target_lanes // hw)
    fits = [d for d in divisors if d <= cap] or [1]
    bt = max(fits)
    # Prefer >=2 grid steps on the "parallel" axis (keeps both v7x TensorCores
    # busy) as long as the per-step output slab stays >=128 lanes (unmasked vst).
    if n // bt < 2:
        smaller = [d for d in fits if n // d >= 2 and d * hw_out >= 128]
        if smaller:
            bt = max(smaller)
    return bt


def inverted_residual_forward(x, params, stride, compute_dtype=COMPUTE_DTYPE):
    assert stride in (1, 2)
    n, in_c, h, w = x.shape
    hw = h * w
    oh, ow = (h, w) if stride == 1 else (h // 2, w // 2)
    hw_out = oh * ow

    w1 = params["w_expand"][:, :, 0, 0]            # (ex_c, in_c)
    ex_c = w1.shape[0]
    w2 = params["w_dw"].reshape(ex_c, 9)           # (ex_c, 9), row-major (kh, kw)
    w3 = params["w_proj"][:, :, 0, 0]              # (out_c, ex_c)
    out_c = w3.shape[0]

    w1f, b1 = _fold_bn(w1, params["bn1"])
    w2f, b2 = _fold_bn(w2, params["bn2"])
    w3f, b3 = _fold_bn(w3, params["bn3"])

    use_skip = stride == 1
    use_conv1x1 = use_skip and (in_c != out_c)
    subsample = stride == 2

    b_tile = _pick_batch_tile(n, hw, hw_out)
    steps = n // b_tile
    lb = b_tile * hw
    lb_out = b_tile * hw_out

    # channels-on-sublanes, (b_tile*H*W)-on-lanes slab per grid step
    xf = (x.reshape(steps, b_tile, in_c, hw)
           .transpose(0, 2, 1, 3)
           .reshape(steps, in_c, lb))

    masks = _make_tap_masks(h, w, b_tile)          # (9, lb)

    in_specs = [
        pl.BlockSpec((1, in_c, lb), lambda i: (i, 0, 0)),   # activations
        pl.BlockSpec((9, lb), lambda i: (0, 0)),            # tap masks
        pl.BlockSpec((ex_c, in_c), lambda i: (0, 0)),       # W1 (bf16)
        pl.BlockSpec((ex_c, 1), lambda i: (0, 0)),          # b1
        pl.BlockSpec((ex_c, 9), lambda i: (0, 0)),          # W2 depthwise (f32)
        pl.BlockSpec((ex_c, 1), lambda i: (0, 0)),          # b2
        pl.BlockSpec((out_c, ex_c), lambda i: (0, 0)),      # W3 (bf16)
        pl.BlockSpec((out_c, 1), lambda i: (0, 0)),         # b3
    ]
    args = [xf, masks,
            w1f.astype(compute_dtype), b1,
            w2f, b2,
            w3f.astype(compute_dtype), b3]
    if use_conv1x1:
        in_specs.append(pl.BlockSpec((out_c, in_c), lambda i: (0, 0)))
        args.append(params["w_skip"][:, :, 0, 0].astype(compute_dtype))
    if subsample:
        # TODO(synk): the 0/1 selector matmul is O(HW^2); for production spatial
        #             sizes use a strided-tap / halo-tiled depthwise instead.
        in_specs.append(pl.BlockSpec((lb, lb_out), lambda i: (0, 0)))
        args.append(_make_stride2_selector(h, w, b_tile, compute_dtype))

    kernel = _make_fused_kernel(w, use_skip, use_conv1x1, subsample, compute_dtype)
    out_flat = pl.pallas_call(
        kernel,
        out_shape=jax.ShapeDtypeStruct((steps, out_c, lb_out), jnp.float32),
        grid_spec=pltpu.PrefetchScalarGridSpec(
            num_scalar_prefetch=0,
            grid=(steps,),
            in_specs=in_specs,
            out_specs=pl.BlockSpec((1, out_c, lb_out), lambda i: (i, 0, 0)),
        ),
        compiler_params=pltpu.CompilerParams(dimension_semantics=("parallel",)),
    )(*args)

    out = (out_flat.reshape(steps, out_c, b_tile, oh, ow)
                   .transpose(0, 2, 1, 3, 4)
                   .reshape(n, out_c, oh, ow))
    return out


# ------------------------------ pure-JAX reference ------------------------------
def _bn_ref(y, bn):
    scale = bn["gamma"] / jnp.sqrt(bn["var"] + EPS)
    shift = bn["beta"] - bn["mean"] * scale
    return y * scale[None, :, None, None] + shift[None, :, None, None]


def reference(x, params, stride):
    dn = ("NCHW", "OIHW", "NCHW")
    ex_c = params["w_expand"].shape[0]
    out_c = params["w_proj"].shape[0]
    in_c = x.shape[1]

    h = lax.conv_general_dilated(x, params["w_expand"], (1, 1),
                                 ((0, 0), (0, 0)), dimension_numbers=dn)
    h = jnp.clip(_bn_ref(h, params["bn1"]), 0.0, 6.0)
    h = lax.conv_general_dilated(h, params["w_dw"], (stride, stride),
                                 ((1, 1), (1, 1)), dimension_numbers=dn,
                                 feature_group_count=ex_c)
    h = jnp.clip(_bn_ref(h, params["bn2"]), 0.0, 6.0)
    h = lax.conv_general_dilated(h, params["w_proj"], (1, 1),
                                 ((0, 0), (0, 0)), dimension_numbers=dn)
    h = _bn_ref(h, params["bn3"])
    if stride == 1:
        if in_c != out_c:
            skip = lax.conv_general_dilated(x, params["w_skip"], (1, 1),
                                            ((0, 0), (0, 0)),
                                            dimension_numbers=dn)
        else:
            skip = x
        return skip + h
    return h


if __name__ == "__main__":
    key = jax.random.PRNGKey(0)
    ks = jax.random.split(key, 8)

    N, in_c, out_c, H, W = 2, 4, 8, 16, 16
    expansion = 6
    ex_c = in_c * expansion            # 24

    def make_bn(c, k):
        k1, k2, k3, k4 = jax.random.split(k, 4)
        return {"gamma": 1.0 + 0.1 * jax.random.normal(k1, (c,), jnp.float32),
                "beta": 0.1 * jax.random.normal(k2, (c,), jnp.float32),
                "mean": 0.1 * jax.random.normal(k3, (c,), jnp.float32),
                "var": jax.random.uniform(k4, (c,), jnp.float32, 0.5, 1.5)}

    x = jax.random.normal(ks[0], (N, in_c, H, W), jnp.float32)
    params = {
        "w_expand": jax.random.normal(ks[1], (ex_c, in_c, 1, 1), jnp.float32) * (1.0 / in_c) ** 0.5,
        "w_dw":     jax.random.normal(ks[2], (ex_c, 1, 3, 3), jnp.float32) * (1.0 / 9.0) ** 0.5,
        "w_proj":   jax.random.normal(ks[3], (out_c, ex_c, 1, 1), jnp.float32) * (1.0 / ex_c) ** 0.5,
        "w_skip":   jax.random.normal(ks[4], (out_c, in_c, 1, 1), jnp.float32) * (1.0 / in_c) ** 0.5,
        "bn1": make_bn(ex_c, ks[5]),
        "bn2": make_bn(ex_c, ks[6]),
        "bn3": make_bn(out_c, ks[7]),
    }

    # stride = 1: skip connection with 1x1 projection on the residual (in_c != out_c)
    out1 = jax.block_until_ready(inverted_residual_forward(x, params, stride=1))
    ref1 = jax.block_until_ready(reference(x, params, stride=1))
    assert out1.shape == (N, out_c, H, W), out1.shape
    err1 = float(jnp.max(jnp.abs(out1 - ref1)))
    assert jnp.allclose(out1, ref1, atol=5e-2, rtol=5e-2), err1

    # stride = 2: no skip connection, spatially downsampled output (in-kernel subsample)
    out2 = jax.block_until_ready(inverted_residual_forward(x, params, stride=2))
    ref2 = jax.block_until_ready(reference(x, params, stride=2))
    assert out2.shape == (N, out_c, H // 2, W // 2), out2.shape
    err2 = float(jnp.max(jnp.abs(out2 - ref2)))
    assert jnp.allclose(out2, ref2, atol=5e-2, rtol=5e-2), err2

    print("KERNEL_OK")
</pallas_src>

<mosaic_0001>
module attributes {stable_mosaic.version = 11 : i64} {
  func.func @kernel(%arg0: i32, %arg1: memref<1x4x256xf32, #tpu.memory_space<vmem>>, %arg2: memref<9x256xf32, #tpu.memory_space<vmem>>, %arg3: memref<24x4xbf16, #tpu.memory_space<vmem>>, %arg4: memref<24x1xf32, #tpu.memory_space<vmem>>, %arg5: memref<24x9xf32, #tpu.memory_space<vmem>>, %arg6: memref<24x1xf32, #tpu.memory_space<vmem>>, %arg7: memref<8x24xbf16, #tpu.memory_space<vmem>>, %arg8: memref<8x1xf32, #tpu.memory_space<vmem>>, %arg9: memref<8x4xbf16, #tpu.memory_space<vmem>>, %arg10: memref<1x8x256xf32, #tpu.memory_space<vmem>>) attributes {dimension_semantics = [#tpu.dimension_semantics<parallel>], iteration_bounds = array<i64: 2>, scalar_prefetch = 0 : i64, scratch_operands = 0 : i64, tpu.core_type = #tpu.core_type<tc>, window_params = [{transform_indices = @transform_0, window_bounds = array<i64: 1, 4, 256>}, {pipeline_mode = #tpu.pipeline_mode<synchronous>, transform_indices = @transform_1, window_bounds = array<i64: 9, 256>}, {pipeline_mode = #tpu.pipeline_mode<synchronous>, transform_indices = @transform_2, window_bounds = array<i64: 24, 4>}, {pipeline_mode = #tpu.pipeline_mode<synchronous>, transform_indices = @transform_3, window_bounds = array<i64: 24, 1>}, {pipeline_mode = #tpu.pipeline_mode<synchronous>, transform_indices = @transform_4, window_bounds = array<i64: 24, 9>}, {pipeline_mode = #tpu.pipeline_mode<synchronous>, transform_indices = @transform_5, window_bounds = array<i64: 24, 1>}, {pipeline_mode = #tpu.pipeline_mode<synchronous>, transform_indices = @transform_6, window_bounds = array<i64: 8, 24>}, {pipeline_mode = #tpu.pipeline_mode<synchronous>, transform_indices = @transform_7, window_bounds = array<i64: 8, 1>}, {pipeline_mode = #tpu.pipeline_mode<synchronous>, transform_indices = @transform_8, window_bounds = array<i64: 8, 4>}, {transform_indices = @transform_9, window_bounds = array<i64: 1, 8, 256>}]} {
    %c0 = arith.constant 0 : index
    %c0_0 = arith.constant 0 : index
    %c0_1 = arith.constant 0 : index
    %0 = vector.load %arg1[%c0, %c0_0, %c0_1] : memref<1x4x256xf32, #tpu.memory_space<vmem>>, vector<1x4x256xf32>
    %1 = vector.shape_cast %0 : vector<1x4x256xf32> to vector<4x256xf32>
    %c0_2 = arith.constant 0 : index
    %c0_3 = arith.constant 0 : index
    %2 = vector.load %arg3[%c0_2, %c0_3] : memref<24x4xbf16, #tpu.memory_space<vmem>>, vector<24x4xbf16>
    %3 = arith.truncf %1 : vector<4x256xf32> to vector<4x256xbf16>
    %cst = arith.constant dense<0.000000e+00> : vector<24x256xf32>
    %4 = tpu.matmul %2, %3, %cst {dimension_numbers = #tpu.dot_dimension_numbers<[1], [0], [0], [1], [0, 0, 1, 1], [], []>} : vector<24x4xbf16>, vector<4x256xbf16>, vector<24x256xf32> -> vector<24x256xf32>
    %c0_4 = arith.constant 0 : index
    %c0_5 = arith.constant 0 : index
    %5 = vector.load %arg4[%c0_4, %c0_5] : memref<24x1xf32, #tpu.memory_space<vmem>>, vector<24x1xf32>
    %6 = vector.broadcast %5 : vector<24x1xf32> to vector<24x256xf32>
    %7 = arith.addf %4, %6 : vector<24x256xf32>
    %cst_6 = arith.constant 0.000000e+00 : f32
    %cst_7 = arith.constant 6.000000e+00 : f32
    %8 = vector.broadcast %cst_6 : f32 to vector<24x256xf32>
    %9 = arith.maximumf %8, %7 : vector<24x256xf32>
    %10 = vector.broadcast %cst_7 : f32 to vector<24x256xf32>
    %11 = arith.minimumf %10, %9 : vector<24x256xf32>
    %c0_8 = arith.constant 0 : index
    %c4 = arith.constant 4 : index
    %12 = vector.load %arg5[%c0_8, %c4] : memref<24x9xf32, #tpu.memory_space<vmem>>, vector<24x1xf32>
    %13 = vector.broadcast %12 : vector<24x1xf32> to vector<24x256xf32>
    %14 = arith.mulf %11, %13 : vector<24x256xf32>
    %c17_i32 = arith.constant 17 : i32
    %15 = tpu.dynamic_rotate %11 by %c17_i32 dim 1 : vector<24x256xf32>, i32 -> vector<24x256xf32>
    %c0_9 = arith.constant 0 : index
    %c0_10 = arith.constant 0 : index
    %16 = vector.load %arg2[%c0_9, %c0_10] : memref<9x256xf32, #tpu.memory_space<vmem>>, vector<1x256xf32>
    %17 = vector.broadcast %16 : vector<1x256xf32> to vector<24x256xf32>
    %18 = arith.mulf %15, %17 : vector<24x256xf32>
    %c0_11 = arith.constant 0 : index
    %c0_12 = arith.constant 0 : index
    %19 = vector.load %arg5[%c0_11, %c0_12] : memref<24x9xf32, #tpu.memory_space<vmem>>, vector<24x1xf32>
    %20 = vector.broadcast %19 : vector<24x1xf32> to vector<24x256xf32>
    %21 = arith.mulf %18, %20 : vector<24x256xf32>
    %22 = arith.addf %14, %21 : vector<24x256xf32>
    %c16_i32 = arith.constant 16 : i32
    %23 = tpu.dynamic_rotate %11 by %c16_i32 dim 1 : vector<24x256xf32>, i32 -> vector<24x256xf32>
    %c1 = arith.constant 1 : index
    %c0_13 = arith.constant 0 : index
    %24 = vector.load %arg2[%c1, %c0_13] : memref<9x256xf32, #tpu.memory_space<vmem>>, vector<1x256xf32>
    %25 = vector.broadcast %24 : vector<1x256xf32> to vector<24x256xf32>
    %26 = arith.mulf %23, %25 : vector<24x256xf32>
    %c0_14 = arith.constant 0 : index
    %c1_15 = arith.constant 1 : index
    %27 = vector.load %arg5[%c0_14, %c1_15] : memref<24x9xf32, #tpu.memory_space<vmem>>, vector<24x1xf32>
    %28 = vector.broadcast %27 : vector<24x1xf32> to vector<24x256xf32>
    %29 = arith.mulf %26, %28 : vector<24x256xf32>
    %30 = arith.addf %22, %29 : vector<24x256xf32>
    %c15_i32 = arith.constant 15 : i32
    %31 = tpu.dynamic_rotate %11 by %c15_i32 dim 1 : vector<24x256xf32>, i32 -> vector<24x256xf32>
    %c2 = arith.constant 2 : index
    %c0_16 = arith.constant 0 : index
    %32 = vector.load %arg2[%c2, %c0_16] : memref<9x256xf32, #tpu.memory_space<vmem>>, vector<1x256xf32>
    %33 = vector.broadcast %32 : vector<1x256xf32> to vector<24x256xf32>
    %34 = arith.mulf %31, %33 : vector<24x256xf32>
    %c0_17 = arith.constant 0 : index
    %c2_18 = arith.constant 2 : index
    %35 = vector.load %arg5[%c0_17, %c2_18] : memref<24x9xf32, #tpu.memory_space<vmem>>, vector<24x1xf32>
    %36 = vector.broadcast %35 : vector<24x1xf32> to vector<24x256xf32>
    %37 = arith.mulf %34, %36 : vector<24x256xf32>
    %38 = arith.addf %30, %37 : vector<24x256xf32>
    %c1_i32 = arith.constant 1 : i32
    %39 = tpu.dynamic_rotate %11 by %c1_i32 dim 1 : vector<24x256xf32>, i32 -> vector<24x256xf32>
    %c3 = arith.constant 3 : index
    %c0_19 = arith.constant 0 : index
    %40 = vector.load %arg2[%c3, %c0_19] : memref<9x256xf32, #tpu.memory_space<vmem>>, vector<1x256xf32>
    %41 = vector.broadcast %40 : vector<1x256xf32> to vector<24x256xf32>
    %42 = arith.mulf %39, %41 : vector<24x256xf32>
    %c0_20 = arith.constant 0 : index
    %c3_21 = arith.constant 3 : index
    %43 = vector.load %arg5[%c0_20, %c3_21] : memref<24x9xf32, #tpu.memory_space<vmem>>, vector<24x1xf32>
    %44 = vector.broadcast %43 : vector<24x1xf32> to vector<24x256xf32>
    %45 = arith.mulf %42, %44 : vector<24x256xf32>
    %46 = arith.addf %38, %45 : vector<24x256xf32>
    %c255_i32 = arith.constant 255 : i32
    %47 = tpu.dynamic_rotate %11 by %c255_i32 dim 1 : vector<24x256xf32>, i32 -> vector<24x256xf32>
    %c5 = arith.constant 5 : index
    %c0_22 = arith.constant 0 : index
    %48 = vector.load %arg2[%c5, %c0_22] : memref<9x256xf32, #tpu.memory_space<vmem>>, vector<1x256xf32>
    %49 = vector.broadcast %48 : vector<1x256xf32> to vector<24x256xf32>
    %50 = arith.mulf %47, %49 : vector<24x256xf32>
    %c0_23 = arith.constant 0 : index
    %c5_24 = arith.constant 5 : index
    %51 = vector.load %arg5[%c0_23, %c5_24] : memref<24x9xf32, #tpu.memory_space<vmem>>, vector<24x1xf32>
    %52 = vector.broadcast %51 : vector<24x1xf32> to vector<24x256xf32>
    %53 = arith.mulf %50, %52 : vector<24x256xf32>
    %54 = arith.addf %46, %53 : vector<24x256xf32>
    %c241_i32 = arith.constant 241 : i32
    %55 = tpu.dynamic_rotate %11 by %c241_i32 dim 1 : vector<24x256xf32>, i32 -> vector<24x256xf32>
    %c6 = arith.constant 6 : index
    %c0_25 = arith.constant 0 : index
    %56 = vector.load %arg2[%c6, %c0_25] : memref<9x256xf32, #tpu.memory_space<vmem>>, vector<1x256xf32>
    %57 = vector.broadcast %56 : vector<1x256xf32> to vector<24x256xf32>
    %58 = arith.mulf %55, %57 : vector<24x256xf32>
    %c0_26 = arith.constant 0 : index
    %c6_27 = arith.constant 6 : index
    %59 = vector.load %arg5[%c0_26, %c6_27] : memref<24x9xf32, #tpu.memory_space<vmem>>, vector<24x1xf32>
    %60 = vector.broadcast %59 : vector<24x1xf32> to vector<24x256xf32>
    %61 = arith.mulf %58, %60 : vector<24x256xf32>
    %62 = arith.addf %54, %61 : vector<24x256xf32>
    %c240_i32 = arith.constant 240 : i32
    %63 = tpu.dynamic_rotate %11 by %c240_i32 dim 1 : vector<24x256xf32>, i32 -> vector<24x256xf32>
    %c7 = arith.constant 7 : index
    %c0_28 = arith.constant 0 : index
    %64 = vector.load %arg2[%c7, %c0_28] : memref<9x256xf32, #tpu.memory_space<vmem>>, vector<1x256xf32>
    %65 = vector.broadcast %64 : vector<1x256xf32> to vector<24x256xf32>
    %66 = arith.mulf %63, %65 : vector<24x256xf32>
    %c0_29 = arith.constant 0 : index
    %c7_30 = arith.constant 7 : index
    %67 = vector.load %arg5[%c0_29, %c7_30] : memref<24x9xf32, #tpu.memory_space<vmem>>, vector<24x1xf32>
    %68 = vector.broadcast %67 : vector<24x1xf32> to vector<24x256xf32>
    %69 = arith.mulf %66, %68 : vector<24x256xf32>
    %70 = arith.addf %62, %69 : vector<24x256xf32>
    %c239_i32 = arith.constant 239 : i32
    %71 = tpu.dynamic_rotate %11 by %c239_i32 dim 1 : vector<24x256xf32>, i32 -> vector<24x256xf32>
    %c8 = arith.constant 8 : index
    %c0_31 = arith.constant 0 : index
    %72 = vector.load %arg2[%c8, %c0_31] : memref<9x256xf32, #tpu.memory_space<vmem>>, vector<1x256xf32>
    %73 = vector.broadcast %72 : vector<1x256xf32> to vector<24x256xf32>
    %74 = arith.mulf %71, %73 : vector<24x256xf32>
    %c0_32 = arith.constant 0 : index
    %c8_33 = arith.constant 8 : index
    %75 = vector.load %arg5[%c0_32, %c8_33] : memref<24x9xf32, #tpu.memory_space<vmem>>, vector<24x1xf32>
    %76 = vector.broadcast %75 : vector<24x1xf32> to vector<24x256xf32>
    %77 = arith.mulf %74, %76 : vector<24x256xf32>
    %78 = arith.addf %70, %77 : vector<24x256xf32>
    %c0_34 = arith.constant 0 : index
    %c0_35 = arith.constant 0 : index
    %79 = vector.load %arg6[%c0_34, %c0_35] : memref<24x1xf32, #tpu.memory_space<vmem>>, vector<24x1xf32>
    %80 = vector.broadcast %79 : vector<24x1xf32> to vector<24x256xf32>
    %81 = arith.addf %78, %80 : vector<24x256xf32>
    %cst_36 = arith.constant 0.000000e+00 : f32
    %cst_37 = arith.constant 6.000000e+00 : f32
    %82 = vector.broadcast %cst_36 : f32 to vector<24x256xf32>
    %83 = arith.maximumf %82, %81 : vector<24x256xf32>
    %84 = vector.broadcast %cst_37 : f32 to vector<24x256xf32>
    %85 = arith.minimumf %84, %83 : vector<24x256xf32>
    %86 = arith.truncf %85 : vector<24x256xf32> to vector<24x256xbf16>
    %c0_38 = arith.constant 0 : index
    %c0_39 = arith.constant 0 : index
    %87 = vector.load %arg7[%c0_38, %c0_39] : memref<8x24xbf16, #tpu.memory_space<vmem>>, vector<8x24xbf16>
    %cst_40 = arith.constant dense<0.000000e+00> : vector<8x256xf32>
    %88 = tpu.matmul %87, %86, %cst_40 {dimension_numbers = #tpu.dot_dimension_numbers<[1], [0], [0], [1], [0, 0, 1, 1], [], []>} : vector<8x24xbf16>, vector<24x256xbf16>, vector<8x256xf32> -> vector<8x256xf32>
    %c0_41 = arith.constant 0 : index
    %c0_42 = arith.constant 0 : index
    %89 = vector.load %arg8[%c0_41, %c0_42] : memref<8x1xf32, #tpu.memory_space<vmem>>, vector<8x1xf32>
    %90 = vector.broadcast %89 : vector<8x1xf32> to vector<8x256xf32>
    %91 = arith.addf %88, %90 : vector<8x256xf32>
    %c0_43 = arith.constant 0 : index
    %c0_44 = arith.constant 0 : index
    %92 = vector.load %arg9[%c0_43, %c0_44] : memref<8x4xbf16, #tpu.memory_space<vmem>>, vector<8x4xbf16>
    %93 = arith.truncf %1 : vector<4x256xf32> to vector<4x256xbf16>
    %cst_45 = arith.constant dense<0.000000e+00> : vector<8x256xf32>
    %94 = tpu.matmul %92, %93, %cst_45 {dimension_numbers = #tpu.dot_dimension_numbers<[1], [0], [0], [1], [0, 0, 1, 1], [], []>} : vector<8x4xbf16>, vector<4x256xbf16>, vector<8x256xf32> -> vector<8x256xf32>
    %95 = arith.addf %91, %94 : vector<8x256xf32>
    %c0_46 = arith.constant 0 : index
    %c0_47 = arith.constant 0 : index
    %c0_48 = arith.constant 0 : index
    %96 = vector.load %arg10[%c0_46, %c0_47, %c0_48] : memref<1x8x256xf32, #tpu.memory_space<vmem>>, vector<1x8x256xf32>
    %97 = vector.shape_cast %96 : vector<1x8x256xf32> to vector<8x256xf32>
    %98 = vector.shape_cast %95 : vector<8x256xf32> to vector<1x8x256xf32>
    tpu.vector_store %arg10[%c0_46, %c0_47, %c0_48], %98 {strides = array<i32>} : memref<1x8x256xf32, #tpu.memory_space<vmem>>, vector<1x8x256xf32>,
    return
  }
  func.func @transform_0(%arg0: i32) -> (i32, i32, i32) {
    %c0_i32 = arith.constant 0 : i32
    %c0_i32_0 = arith.constant 0 : i32
    %c0_i32_1 = arith.constant 0 : i32
    return %arg0, %c0_i32, %c0_i32_0 : i32, i32, i32
  }
  func.func @transform_1(%arg0: i32) -> (i32, i32) {
    %c0_i32 = arith.constant 0 : i32
    %c0_i32_0 = arith.constant 0 : i32
    %c0_i32_1 = arith.constant 0 : i32
    return %c0_i32, %c0_i32_0 : i32, i32
  }
  func.func @transform_2(%arg0: i32) -> (i32, i32) {
    %c0_i32 = arith.constant 0 : i32
    %c0_i32_0 = arith.constant 0 : i32
    %c0_i32_1 = arith.constant 0 : i32
    return %c0_i32, %c0_i32_0 : i32, i32
  }
  func.func @transform_3(%arg0: i32) -> (i32, i32) {
    %c0_i32 = arith.constant 0 : i32
    %c0_i32_0 = arith.constant 0 : i32
    %c0_i32_1 = arith.constant 0 : i32
    return %c0_i32, %c0_i32_0 : i32, i32
  }
  func.func @transform_4(%arg0: i32) -> (i32, i32) {
    %c0_i32 = arith.constant 0 : i32
    %c0_i32_0 = arith.constant 0 : i32
    %c0_i32_1 = arith.constant 0 : i32
    return %c0_i32, %c0_i32_0 : i32, i32
  }
  func.func @transform_5(%arg0: i32) -> (i32, i32) {
    %c0_i32 = arith.constant 0 : i32
    %c0_i32_0 = arith.constant 0 : i32
    %c0_i32_1 = arith.constant 0 : i32
    return %c0_i32, %c0_i32_0 : i32, i32
  }
  func.func @transform_6(%arg0: i32) -> (i32, i32) {
    %c0_i32 = arith.constant 0 : i32
    %c0_i32_0 = arith.constant 0 : i32
    %c0_i32_1 = arith.constant 0 : i32
    return %c0_i32, %c0_i32_0 : i32, i32
  }
  func.func @transform_7(%arg0: i32) -> (i32, i32) {
    %c0_i32 = arith.constant 0 : i32
    %c0_i32_0 = arith.constant 0 : i32
    %c0_i32_1 = arith.constant 0 : i32
    return %c0_i32, %c0_i32_0 : i32, i32
  }
  func.func @transform_8(%arg0: i32) -> (i32, i32) {
    %c0_i32 = arith.constant 0 : i32
    %c0_i32_0 = arith.constant 0 : i32
    %c0_i32_1 = arith.constant 0 : i32
    return %c0_i32, %c0_i32_0 : i32, i32
  }
  func.func @transform_9(%arg0: i32) -> (i32, i32, i32) {
    %c0_i32 = arith.constant 0 : i32
    %c0_i32_0 = arith.constant 0 : i32
    %c0_i32_1 = arith.constant 0 : i32
    return %arg0, %c0_i32, %c0_i32_0 : i32, i32, i32
  }
}

</mosaic_0001>

<llo_original>
// kernel: tpu_custom_call.1
$region0: #{tpu_custom_call.1}
  #allocation0 [shape = 'u32[]', space=smem, size = 0x4, offset = 0x4, fixed_abs, tag = 'smem constant byte address 0x4 - core index']
  #allocation1 [shape = 'u32[72,128]{1,0:T(1,128)}', space=vmem, size = 0x9000, scoped, tag = 'internal scratch']
  %s0 = inlined_call_operand.vmem [shape: f32[2,4,256], index: 0, kind: input, shape index: {}]
  %s1 = inlined_call_operand.vmem [shape: f32[9,256], index: 1, kind: input, shape index: {}]
  %s2 = inlined_call_operand.vmem [shape: bf16[24,4], index: 2, kind: input, shape index: {}]
  %s3 = inlined_call_operand.vmem [shape: f32[24,1], index: 3, kind: input, shape index: {}]
  %s4 = inlined_call_operand.vmem [shape: f32[24,9], index: 4, kind: input, shape index: {}]
  %s5 = inlined_call_operand.vmem [shape: f32[24,1], index: 5, kind: input, shape index: {}]
  %s6 = inlined_call_operand.vmem [shape: bf16[8,24], index: 6, kind: input, shape index: {}]
  %s7 = inlined_call_operand.vmem [shape: f32[8,1], index: 7, kind: input, shape index: {}]
  %s8 = inlined_call_operand.vmem [shape: bf16[8,4], index: 8, kind: input, shape index: {}]
  %s9 = inlined_call_operand.hbm [shape: f32[2,8,256], index: 9, kind: output, shape index: {}]
  %s10 = sld [smem:[#allocation0]]
  $region69: #{tpu_custom_call.1} parent=0
    _
  %s12 = ssub.s32 1, %s10
  %s13 = scalar_select 0, %s12, %s10
  $region1: #{tpu_custom_call.1} parent=0
    #allocation2 [shape = 'u8[16384]{0}', space=vmem, size = 0x4000, scoped, tag = 'output window, operand 0']
    #allocation3 [shape = 's32[2]{0}', space=sflag, size = 0x8, scoped, tag = 'scoped memory for tpu_custom_call.1']
    %14 = vsyncpa [#allocation3], 0
    %s15 = scalar_lea.sflag [#allocation3], 1
    %16 = vsyncpa %s15, 0
    loop: start=0, step=1, limit=4
    $region2: #{tpu_custom_call.1} parent=1 // loop_pre_header
      _
    $region3: #{tpu_custom_call.1} parent=1 // loop_header
      %s18 = sphi 0, %s22
      %p19 = scmp.ge.s32.totalorder %s18, 4
      %s28 = sphi 0, %s30
      %s31 = sphi 0, %s28
      %s32 = sphi 0, %s31
      %s48 = sphi 0, %s32
      %s52 = sphi 0, %s52
      %s54 = sphi 0, %s52
      %s55 = sphi 0, %s54
      %s69 = sphi 0, %s55
      %s73 = sphi 0, %s73
      %s75 = sphi 0, %s73
      %s76 = sphi 0, %s75
      %s90 = sphi 0, %s76
      %s94 = sphi 0, %s94
      %s96 = sphi 0, %s94
      %s97 = sphi 0, %s96
      %s111 = sphi 0, %s97
      %s115 = sphi 0, %s115
      %s117 = sphi 0, %s115
      %s118 = sphi 0, %s117
      %s132 = sphi 0, %s118
      %s136 = sphi 0, %s136
      %s138 = sphi 0, %s136
      %s139 = sphi 0, %s138
      %s153 = sphi 0, %s139
      %s157 = sphi 0, %s157
      %s159 = sphi 0, %s157
      %s160 = sphi 0, %s159
      %s174 = sphi 0, %s160
      %s178 = sphi 0, %s178
      %s180 = sphi 0, %s178
      %s181 = sphi 0, %s180
      %s195 = sphi 0, %s181
      %s199 = sphi 0, %s199
      %s201 = sphi 0, %s199
      %s202 = sphi 0, %s201
      %s216 = sphi 0, %s202
      %s222 = sphi 0, %s224
      %s225 = sphi 0, %s222
      %s226 = sphi 0, %s225
      %s242 = sphi 0, %s226
    $region4: #{tpu_custom_call.1} parent=1 // loop_header_branch
      %21 = sbr.rel (%p19) target = $region8
    $region5: #{tpu_custom_call.1} parent=1 // loop_body
      %s23 = ssub.s32 %s18, 1
      %s24 = ssub.s32 %s18, 2
      %s25 = sadd.s32 %s18, 1
      %s26 = ssub.s32 %s18, %s25
      %p27 = scmp.eq.s32.totalorder %s26, 0
      %s29 = sadd.s32 %s28, 1
      %s30 = scalar_select %p27, %s28, %s29
      %p33 = pneg %p27
      %p34 = scmp.eq.s32.totalorder %s18, 1
      %p35 = por %p33, %p34
      %p36 = scmp.ne.s32.totalorder %s28, %s31
      %p37 = scmp.eq.s32.totalorder %s18, 0
      %p38 = por %p36, %p37
      %p39 = scmp.ne.s32.totalorder %s28, %s31
      %p40 = scmp.eq.s32.totalorder %s23, 1
      %p41 = por %p39, %p40
      %p42 = scmp.ne.s32.totalorder %s31, %s32
      %p43 = scmp.eq.s32.totalorder %s23, 0
      %p44 = por %p42, %p43
      %p45 = scmp.ne.s32.totalorder %s31, %s32
      %p46 = scmp.eq.s32.totalorder %s24, 1
      %p47 = por %p45, %p46
      %p49 = scmp.ne.s32.totalorder %s32, %s48
      %p50 = scmp.eq.s32.totalorder %s24, 0
      %p51 = por %p49, %p50
      %s53 = sadd.s32 %s52, 1
      %p56 = scmp.eq.s32.totalorder %s18, 1
      %p57 = scmp.ne.s32.totalorder %s52, %s54
      %p58 = scmp.eq.s32.totalorder %s18, 0
      %p59 = por %p57, %p58
      %p60 = scmp.ne.s32.totalorder %s52, %s54
      %p61 = scmp.eq.s32.totalorder %s23, 1
      %p62 = por %p60, %p61
      %p63 = scmp.ne.s32.totalorder %s54, %s55
      %p64 = scmp.eq.s32.totalorder %s23, 0
      %p65 = por %p63, %p64
      %p66 = scmp.ne.s32.totalorder %s54, %s55
      %p67 = scmp.eq.s32.totalorder %s24, 1
      %p68 = por %p66, %p67
      %p70 = scmp.ne.s32.totalorder %s55, %s69
      %p71 = scmp.eq.s32.totalorder %s24, 0
      %p72 = por %p70, %p71
      %s74 = sadd.s32 %s73, 1
      %p77 = scmp.eq.s32.totalorder %s18, 1
      %p78 = scmp.ne.s32.totalorder %s73, %s75
      %p79 = scmp.eq.s32.totalorder %s18, 0
      %p80 = por %p78, %p79
      %p81 = scmp.ne.s32.totalorder %s73, %s75
      %p82 = scmp.eq.s32.totalorder %s23, 1
      %p83 = por %p81, %p82
      %p84 = scmp.ne.s32.totalorder %s75, %s76
      %p85 = scmp.eq.s32.totalorder %s23, 0
      %p86 = por %p84, %p85
      %p87 = scmp.ne.s32.totalorder %s75, %s76
      %p88 = scmp.eq.s32.totalorder %s24, 1
      %p89 = por %p87, %p88
      %p91 = scmp.ne.s32.totalorder %s76, %s90
      %p92 = scmp.eq.s32.totalorder %s24, 0
      %p93 = por %p91, %p92
      %s95 = sadd.s32 %s94, 1
      %p98 = scmp.eq.s32.totalorder %s18, 1
      %p99 = scmp.ne.s32.totalorder %s94, %s96
      %p100 = scmp.eq.s32.totalorder %s18, 0
      %p101 = por %p99, %p100
      %p102 = scmp.ne.s32.totalorder %s94, %s96
      %p103 = scmp.eq.s32.totalorder %s23, 1
      %p104 = por %p102, %p103
      %p105 = scmp.ne.s32.totalorder %s96, %s97
      %p106 = scmp.eq.s32.totalorder %s23, 0
      %p107 = por %p105, %p106
      %p108 = scmp.ne.s32.totalorder %s96, %s97
      %p109 = scmp.eq.s32.totalorder %s24, 1
      %p110 = por %p108, %p109
      %p112 = scmp.ne.s32.totalorder %s97, %s111
      %p113 = scmp.eq.s32.totalorder %s24, 0
      %p114 = por %p112, %p113
      %s116 = sadd.s32 %s115, 1
      %p119 = scmp.eq.s32.totalorder %s18, 1
      %p120 = scmp.ne.s32.totalorder %s115, %s117
      %p121 = scmp.eq.s32.totalorder %s18, 0
      %p122 = por %p120, %p121
      %p123 = scmp.ne.s32.totalorder %s115, %s117
      %p124 = scmp.eq.s32.totalorder %s23, 1
      %p125 = por %p123, %p124
      %p126 = scmp.ne.s32.totalorder %s117, %s118
      %p127 = scmp.eq.s32.totalorder %s23, 0
      %p128 = por %p126, %p127
      %p129 = scmp.ne.s32.totalorder %s117, %s118
      %p130 = scmp.eq.s32.totalorder %s24, 1
      %p131 = por %p129, %p130
      %p133 = scmp.ne.s32.totalorder %s118, %s132
      %p134 = scmp.eq.s32.totalorder %s24, 0
      %p135 = por %p133, %p134
      %s137 = sadd.s32 %s136, 1
      %p140 = scmp.eq.s32.totalorder %s18, 1
      %p141 = scmp.ne.s32.totalorder %s136, %s138
      %p142 = scmp.eq.s32.totalorder %s18, 0
      %p143 = por %p141, %p142
      %p144 = scmp.ne.s32.totalorder %s136, %s138
      %p145 = scmp.eq.s32.totalorder %s23, 1
      %p146 = por %p144, %p145
      %p147 = scmp.ne.s32.totalorder %s138, %s139
      %p148 = scmp.eq.s32.totalorder %s23, 0
      %p149 = por %p147, %p148
      %p150 = scmp.ne.s32.totalorder %s138, %s139
      %p151 = scmp.eq.s32.totalorder %s24, 1
      %p152 = por %p150, %p151
      %p154 = scmp.ne.s32.totalorder %s139, %s153
      %p155 = scmp.eq.s32.totalorder %s24, 0
      %p156 = por %p154, %p155
      %s158 = sadd.s32 %s157, 1
      %p161 = scmp.eq.s32.totalorder %s18, 1
      %p162 = scmp.ne.s32.totalorder %s157, %s159
      %p163 = scmp.eq.s32.totalorder %s18, 0
      %p164 = por %p162, %p163
      %p165 = scmp.ne.s32.totalorder %s157, %s159
      %p166 = scmp.eq.s32.totalorder %s23, 1
      %p167 = por %p165, %p166
      %p168 = scmp.ne.s32.totalorder %s159, %s160
      %p169 = scmp.eq.s32.totalorder %s23, 0
      %p170 = por %p168, %p169
      %p171 = scmp.ne.s32.totalorder %s159, %s160
      %p172 = scmp.eq.s32.totalorder %s24, 1
      %p173 = por %p171, %p172
      %p175 = scmp.ne.s32.totalorder %s160, %s174
      %p176 = scmp.eq.s32.totalorder %s24, 0
      %p177 = por %p175, %p176
      %s179 = sadd.s32 %s178, 1
      %p182 = scmp.eq.s32.totalorder %s18, 1
      %p183 = scmp.ne.s32.totalorder %s178, %s180
      %p184 = scmp.eq.s32.totalorder %s18, 0
      %p185 = por %p183, %p184
      %p186 = scmp.ne.s32.totalorder %s178, %s180
      %p187 = scmp.eq.s32.totalorder %s23, 1
      %p188 = por %p186, %p187
      %p189 = scmp.ne.s32.totalorder %s180, %s181
      %p190 = scmp.eq.s32.totalorder %s23, 0
      %p191 = por %p189, %p190
      %p192 = scmp.ne.s32.totalorder %s180, %s181
      %p193 = scmp.eq.s32.totalorder %s24, 1
      %p194 = por %p192, %p193
      %p196 = scmp.ne.s32.totalorder %s181, %s195
      %p197 = scmp.eq.s32.totalorder %s24, 0
      %p198 = por %p196, %p197
      %s200 = sadd.s32 %s199, 1
      %p203 = scmp.eq.s32.totalorder %s18, 1
      %p204 = scmp.ne.s32.totalorder %s199, %s201
      %p205 = scmp.eq.s32.totalorder %s18, 0
      %p206 = por %p204, %p205
      %p207 = scmp.ne.s32.totalorder %s199, %s201
      %p208 = scmp.eq.s32.totalorder %s23, 1
      %p209 = por %p207, %p208
      %p210 = scmp.ne.s32.totalorder %s201, %s202
      %p211 = scmp.eq.s32.totalorder %s23, 0
      %p212 = por %p210, %p211
      %p213 = scmp.ne.s32.totalorder %s201, %s202
      %p214 = scmp.eq.s32.totalorder %s24, 1
      %p215 = por %p213, %p214
      %p217 = scmp.ne.s32.totalorder %s202, %s216
      %p218 = scmp.eq.s32.totalorder %s24, 0
      %p219 = por %p217, %p218
      %s220 = ssub.s32 %s18, %s25
      %p221 = scmp.eq.s32.totalorder %s220, 0
      %s223 = sadd.s32 %s222, 1
      %s224 = scalar_select %p221, %s222, %s223
      %p227 = pneg %p221
      %p228 = scmp.eq.s32.totalorder %s18, 1
      %p229 = por %p227, %p228
      %p230 = scmp.ne.s32.totalorder %s222, %s225
      %p231 = scmp.eq.s32.totalorder %s18, 0
      %p232 = por %p230, %p231
      %p233 = scmp.ne.s32.totalorder %s222, %s225
      %p234 = scmp.eq.s32.totalorder %s23, 1
      %p235 = por %p233, %p234
      %p236 = scmp.ne.s32.totalorder %s225, %s226
      %p237 = scmp.eq.s32.totalorder %s23, 0
      %p238 = por %p236, %p237
      %p239 = scmp.ne.s32.totalorder %s225, %s226
      %p240 = scmp.eq.s32.totalorder %s24, 1
      %p241 = por %p239, %p240
      %p243 = scmp.ne.s32.totalorder %s226, %s242
      %p244 = scmp.eq.s32.totalorder %s24, 0
      %p245 = por %p243, %p244
      %p246 = scmp.le.s32.totalorder 1, %s18
      %p247 = scmp.lt.s32.totalorder %s18, 3
      %p248 = pnand %p246, %p247
      %p249 = pneg %p248
      // Predicated region
      $region9: #{tpu_custom_call.1} parent=5 // pred_check
        _
      $region10: #{tpu_custom_call.1} parent=5 // pred_check_branch
        %251 = sbr.rel (%p248) target = $region12
      $region11: #{tpu_custom_call.1} parent=5 // pred_region
        %s252 = ssub.s32 %s18, 1
        // Predicated region
        $region13: #{tpu_custom_call.1} parent=11 // pred_check
          %p253 = pneg %p65
        $region14: #{tpu_custom_call.1} parent=11 // pred_check_branch
          %255 = sbr.rel (%p253) target = $region16
        $region15: #{tpu_custom_call.1} parent=11 // pred_region
          _
        $region16: #{tpu_custom_call.1} parent=11 // pred_fallthru
          _
        // Predicated region
        $region17: #{tpu_custom_call.1} parent=11 // pred_check
          %p256 = pneg %p86
        $region18: #{tpu_custom_call.1} parent=11 // pred_check_branch
          %258 = sbr.rel (%p256) target = $region20
        $region19: #{tpu_custom_call.1} parent=11 // pred_region
          _
        $region20: #{tpu_custom_call.1} parent=11 // pred_fallthru
          _
        // Predicated region
        $region21: #{tpu_custom_call.1} parent=11 // pred_check
          %p259 = pneg %p107
        $region22: #{tpu_custom_call.1} parent=11 // pred_check_branch
          %261 = sbr.rel (%p259) target = $region24
        $region23: #{tpu_custom_call.1} parent=11 // pred_region
          _
        $region24: #{tpu_custom_call.1} parent=11 // pred_fallthru
          _
        // Predicated region
        $region25: #{tpu_custom_call.1} parent=11 // pred_check
          %p262 = pneg %p128
        $region26: #{tpu_custom_call.1} parent=11 // pred_check_branch
          %264 = sbr.rel (%p262) target = $region28
        $region27: #{tpu_custom_call.1} parent=11 // pred_region
          _
        $region28: #{tpu_custom_call.1} parent=11 // pred_fallthru
          _
        // Predicated region
        $region29: #{tpu_custom_call.1} parent=11 // pred_check
          %p265 = pneg %p149
        $region30: #{tpu_custom_call.1} parent=11 // pred_check_branch
          %267 = sbr.rel (%p265) target = $region32
        $region31: #{tpu_custom_call.1} parent=11 // pred_region
          _
        $region32: #{tpu_custom_call.1} parent=11 // pred_fallthru
          _
        // Predicated region
        $region33: #{tpu_custom_call.1} parent=11 // pred_check
          %p268 = pneg %p170
        $region34: #{tpu_custom_call.1} parent=11 // pred_check_branch
          %270 = sbr.rel (%p268) target = $region36
        $region35: #{tpu_custom_call.1} parent=11 // pred_region
          _
        $region36: #{tpu_custom_call.1} parent=11 // pred_fallthru
          _
        // Predicated region
        $region37: #{tpu_custom_call.1} parent=11 // pred_check
          %p271 = pneg %p191
        $region38: #{tpu_custom_call.1} parent=11 // pred_check_branch
          %273 = sbr.rel (%p271) target = $region40
        $region39: #{tpu_custom_call.1} parent=11 // pred_region
          _
        $region40: #{tpu_custom_call.1} parent=11 // pred_fallthru
          _
        // Predicated region
        $region41: #{tpu_custom_call.1} parent=11 // pred_check
          %p274 = pneg %p212
        $region42: #{tpu_custom_call.1} parent=11 // pred_check_branch
          %276 = sbr.rel (%p274) target = $region44
        $region43: #{tpu_custom_call.1} parent=11 // pred_region
          _
        $region44: #{tpu_custom_call.1} parent=11 // pred_fallthru
          _
      $region12: #{tpu_custom_call.1} parent=5 // pred_fallthru
        _
      %p277 = scmp.lt.s32.totalorder %s18, 2
      // Predicated region
      $region45: #{tpu_custom_call.1} parent=5 // pred_check
        %p278 = pneg %p277
      $region46: #{tpu_custom_call.1} parent=5 // pred_check_branch
        %280 = sbr.rel (%p278) target = $region48
      $region47: #{tpu_custom_call.1} parent=5 // pred_region
        // Predicated region
        $region49: #{tpu_custom_call.1} parent=47 // pred_check
          %p281 = pneg %p38
        $region50: #{tpu_custom_call.1} parent=47 // pred_check_branch
          %283 = sbr.rel (%p281) target = $region52
        $region51: #{tpu_custom_call.1} parent=47 // pred_region
          %p284 = scmp.lt.s32.totalorder %s18, 1
          %s285 = scalar_select %p284, %s18, 1
          %s286 = smul.addr %s285, 2
          %s287 = smul.addr %s286, 4
          %s288 = scalar_lea.vmem %s0, %s287
        $region52: #{tpu_custom_call.1} parent=47 // pred_fallthru
          _
      $region48: #{tpu_custom_call.1} parent=5 // pred_fallthru
        _
      %p289 = scmp.le.s32.totalorder 1, %s18
      %p290 = scmp.lt.s32.totalorder %s18, 3
      %p291 = pnand %p289, %p290
      %p292 = pneg %p291
      // Predicated region
      $region53: #{tpu_custom_call.1} parent=5 // pred_check
        _
      $region54: #{tpu_custom_call.1} parent=5 // pred_check_branch
        %294 = sbr.rel (%p291) target = $region56
      $region55: #{tpu_custom_call.1} parent=5 // pred_region
        %s295 = ssub.s32 %s18, 1
        %p296 = scmp.lt.s32.totalorder %s23, 1
        %s297 = scalar_select %p296, %s23, 1
        %s298 = smul.addr %s297, 2
        %s299 = smul.addr %s298, 4
        %s300 = scalar_lea.vmem %s0, %s299
        %p301 = pneg %p44
        %p302 = pneg %p41
        %p303 = pneg %p65
        %p304 = pneg %p62
        %p305 = pneg %p86
        %p306 = pneg %p83
        %p307 = pneg %p107
        %p308 = pneg %p104
        %p309 = pneg %p128
        %p310 = pneg %p125
        %p311 = pneg %p149
        %p312 = pneg %p146
        %p313 = pneg %p170
        %p314 = pneg %p167
        %p315 = pneg %p191
        %p316 = pneg %p188
        %p317 = pneg %p212
        %p318 = pneg %p209
        %p319 = pneg %p238
        %p320 = pneg %p235
        %s321 = sand.u32 %s225, 1
        %s322 = scalar_lea.sflag [#allocation3], %s321
        %s323 = sand.u32 %s225, 1
        %s324 = smul.addr %s323, 16
        %s325 = scalar_lea.vmem [#allocation2], %s324
        %p326 = scmp.lt.s32.totalorder %s23, 1
        %s327 = scalar_select %p326, %s23, 1
        %s328 = smul.addr %s327, 2
        %s329 = smul.addr %s328, 4
        %s330 = scalar_lea.vmem %s0, %s329
        %v332 = vld [vmem:[%s330] sm:$0xff]
        %v333 = vld [vmem:[%s2] sm:$0xf]
        %v334 = vld [vmem:[%s2 + $0x4] sm:$0xf]
        %v335 = vld [vmem:[%s2 + $0x8] sm:$0xf]
        %337 = vst [vmem:[#allocation1] ss:$2 sm:$0xff] %v332
        %v338 = vld.sshfl [vmem:[#allocation1] sm:$0xff pattern:$0x75316420]
        %v339 = vld.sshfl [vmem:[#allocation1 + $0x8] sm:$0xff pattern:$0x75316420]
        %v342 = vpack.c.bf16 %v338, %v338
        %v343 = vpack.c.bf16 %v339, %v339
        %v344 = vld [vmem:[%s3] sm:$0xff]
        %v345 = vld [vmem:[%s3 + $0x8] sm:$0xff]
        %v346 = vld [vmem:[%s3 + $0x10] sm:$0xff]
        %348 = vset.pattern.permute.xlu0 0
        %349 = vperm.xlu0 %348, %v344
        %v350 = vpop.permute.xlu0 %349
        %353 = vset.pattern.permute.xlu0 0
        %354 = vperm.xlu0 %353, %v345
        %v355 = vpop.permute.xlu0 %354
        %358 = vset.pattern.permute.xlu0 0
        %359 = vperm.xlu0 %358, %v346
        %v360 = vpop.permute.xlu0 %359
        %v365 = vunpack.c.l.b16 %v333
        %v366 = vunpack.c.l.b16 %v334
        %v367 = vunpack.c.l.b16 %v335
        %v368 = vpack.c.b16 %v366, %v365
        %v369 = vpack.c.b16 %v367, %v367
        %vm370 = vcmask 31744
        %v372 = vsel %vm370, %v368, 0
        %v375 = vsel %vm370, %v369, 0
        %vm377 = vcmask 1041408
        %v379 = vsel %vm377, %v342, 0
        %v382 = vsel %vm377, %v343, 0
        %384 = vmatpush.bf16.msra.mxu0 0
        %385 = vmatpush.bf16.msra.mxu0 0
        %386 = vmatpush.bf16.msra.mxu0 0
        %387 = vmatpush.bf16.msra.mxu0 0
        %388 = vmatpush.bf16.msra.mxu0 0
        %389 = vmatpush.bf16.msra.mxu0 0
        %390 = vmatpush.bf16.msra.mxu0 0
        %391 = vmatpush.bf16.msra.mxu0 %v379
        %392 = vmatmul.bf16.gmra.mxu0 %v372
        %v393 = vpop.f32.mrf.mxu0
        %v394 = vadd.f32 %v350, %v393
        %v395 = vpop.f32.mrf.mxu0
        %v396 = vadd.f32 %v355, %v395
        %397 = vmatmul.bf16.gmra.mxu0 %v375
        %v398 = vpop.f32.mrf.mxu0
        %v399 = vadd.f32 %v360, %v398
        %v400 = vpop.f32.mrf.mxu0
        %401 = vdwg.mxu0
        %402 = vmatpush.bf16.msra.mxu0 0
        %403 = vmatpush.bf16.msra.mxu0 0
        %404 = vmatpush.bf16.msra.mxu0 0
        %405 = vmatpush.bf16.msra.mxu0 0
        %406 = vmatpush.bf16.msra.mxu0 0
        %407 = vmatpush.bf16.msra.mxu0 0
        %408 = vmatpush.bf16.msra.mxu0 0
        %409 = vmatpush.bf16.msra.mxu0 %v382
        %410 = vmatmul.bf16.gmra.mxu0 %v372
        %v411 = vpop.f32.mrf.mxu0
        %v412 = vadd.f32 %v350, %v411
        %v413 = vpop.f32.mrf.mxu0
        %v414 = vadd.f32 %v355, %v413
        %415 = vmatmul.bf16.gmra.mxu0 %v375
        %v416 = vpop.f32.mrf.mxu0
        %v417 = vadd.f32 %v360, %v416
        %v418 = vpop.f32.mrf.mxu0
        %419 = vdwg.mxu0
        %v420 = vmax.f32 %v394, 0.0
        %v421 = vmax.f32 %v412, 0.0
        %v422 = vmax.f32 %v396, 0.0
        %v423 = vmax.f32 %v414, 0.0
        %v424 = vmax.f32 %v399, 0.0
        %v425 = vmax.f32 %v417, 0.0
        %v426 = vmin.f32 %v420, 6.0
        %v427 = vmin.f32 %v421, 6.0
        %v428 = vmin.f32 %v422, 6.0
        %v429 = vmin.f32 %v423, 6.0
        %v430 = vmin.f32 %v424, 6.0
        %v431 = vmin.f32 %v425, 6.0
        %v432 = vld [vmem:[%s4] sm:$0xff]
        %v433 = vld [vmem:[%s4 + $0x8] sm:$0xff]
        %v434 = vld [vmem:[%s4 + $0x10] sm:$0xff]
        %436 = vset.pattern.permute.xlu0 4
        %437 = vperm.xlu0 %436, %v432
        %v438 = vpop.permute.xlu0 %437
        %441 = vset.pattern.permute.xlu0 4
        %442 = vperm.xlu0 %441, %v433
        %v443 = vpop.permute.xlu0 %442
        %446 = vset.pattern.permute.xlu0 4
        %447 = vperm.xlu0 %446, %v434
        %v448 = vpop.permute.xlu0 %447
        %v450 = vmul.f32 %v426, %v438
        %v451 = vmul.f32 %v427, %v438
        %v452 = vmul.f32 %v428, %v443
        %v453 = vmul.f32 %v429, %v443
        %v454 = vmul.f32 %v430, %v448
        %v455 = vmul.f32 %v431, %v448
        %456 = vrot.lane.b32.xlu0 %v426, 17
        %v457 = vpop.permute.xlu0 %456
        %458 = vrot.lane.b32.xlu0 %v428, 17
        %v459 = vpop.permute.xlu0 %458
        %460 = vrot.lane.b32.xlu0 %v430, 17
        %v461 = vpop.permute.xlu0 %460
        %462 = vrot.lane.b32.xlu0 %v427, 17
        %v463 = vpop.permute.xlu0 %462
        %464 = vrot.lane.b32.xlu0 %v429, 17
        %v465 = vpop.permute.xlu0 %464
        %466 = vrot.lane.b32.xlu0 %v431, 17
        %v467 = vpop.permute.xlu0 %466
        %v468 = vlaneseq
        %v469 = vand.u32 %v468, 127
        %vm470 = vcmp.lt.s32.totalorder %v469, 17
        %v471 = vsel %vm470, %v457, %v463
        %v472 = vsel %vm470, %v459, %v465
        %v473 = vsel %vm470, %v461, %v467
        %v474 = vsel %vm470, %v463, %v457
        %v475 = vsel %vm470, %v465, %v459
        %v476 = vsel %vm470, %v467, %v461
        %v477 = vld [vmem:[%s1] ss:$8 sm:$0x3]
        %v479 = vperm.slane %v477, 0
        %v480 = vperm.slane %v477, 1
        %v483 = vmul.f32 %v474, %v479
        %v484 = vmul.f32 %v471, %v480
        %v485 = vmul.f32 %v475, %v479
        %v486 = vmul.f32 %v472, %v480
        %v487 = vmul.f32 %v476, %v479
        %v488 = vmul.f32 %v473, %v480
        %489 = vset.pattern.permute.xlu0 0
        %490 = vperm.xlu0 %489, %v432
        %v491 = vpop.permute.xlu0 %490
        %493 = vset.pattern.permute.xlu0 0
        %494 = vperm.xlu0 %493, %v433
        %v495 = vpop.permute.xlu0 %494
        %497 = vset.pattern.permute.xlu0 0
        %498 = vperm.xlu0 %497, %v434
        %v499 = vpop.permute.xlu0 %498
        %v501 = vmul.f32 %v483, %v491
        %v502 = vmul.f32 %v484, %v491
        %v503 = vmul.f32 %v485, %v495
        %v504 = vmul.f32 %v486, %v495
        %v505 = vmul.f32 %v487, %v499
        %v506 = vmul.f32 %v488, %v499
        %v507 = vadd.f32 %v450, %v501
        %v508 = vadd.f32 %v451, %v502
        %v509 = vadd.f32 %v452, %v503
        %v510 = vadd.f32 %v453, %v504
        %v511 = vadd.f32 %v454, %v505
        %v512 = vadd.f32 %v455, %v506
        %513 = vrot.lane.b32.xlu0 %v426, 16
        %v514 = vpop.permute.xlu0 %513
        %515 = vrot.lane.b32.xlu0 %v428, 16
        %v516 = vpop.permute.xlu0 %515
        %517 = vrot.lane.b32.xlu0 %v430, 16
        %v518 = vpop.permute.xlu0 %517
        %519 = vrot.lane.b32.xlu0 %v427, 16
        %v520 = vpop.permute.xlu0 %519
        %521 = vrot.lane.b32.xlu0 %v429, 16
        %v522 = vpop.permute.xlu0 %521
        %523 = vrot.lane.b32.xlu0 %v431, 16
        %v524 = vpop.permute.xlu0 %523
        %vm525 = vcmp.lt.s32.totalorder %v469, 16
        %v526 = vsel %vm525, %v514, %v520
        %v527 = vsel %vm525, %v516, %v522
        %v528 = vsel %vm525, %v518, %v524
        %v529 = vsel %vm525, %v520, %v514
        %v530 = vsel %vm525, %v522, %v516
        %v531 = vsel %vm525, %v524, %v518
        %s532 = scalar_lea.vmem %s1, 1
        %v533 = vld [vmem:[%s532] ss:$8 sm:$0x3]
        %v535 = vperm.slane %v533, 0
        %v536 = vperm.slane %v533, 1
        %v539 = vmul.f32 %v529, %v535
        %v540 = vmul.f32 %v526, %v536
        %v541 = vmul.f32 %v530, %v535
        %v542 = vmul.f32 %v527, %v536
        %v543 = vmul.f32 %v531, %v535
        %v544 = vmul.f32 %v528, %v536
        %545 = vset.pattern.permute.xlu0 1
        %546 = vperm.xlu0 %545, %v432
        %v547 = vpop.permute.xlu0 %546
        %549 = vset.pattern.permute.xlu0 1
        %550 = vperm.xlu0 %549, %v433
        %v551 = vpop.permute.xlu0 %550
        %553 = vset.pattern.permute.xlu0 1
        %554 = vperm.xlu0 %553, %v434
        %v555 = vpop.permute.xlu0 %554
        %v557 = vmul.f32 %v539, %v547
        %v558 = vmul.f32 %v540, %v547
        %v559 = vmul.f32 %v541, %v551
        %v560 = vmul.f32 %v542, %v551
        %v561 = vmul.f32 %v543, %v555
        %v562 = vmul.f32 %v544, %v555
        %v563 = vadd.f32 %v507, %v557
        %v564 = vadd.f32 %v508, %v558
        %v565 = vadd.f32 %v509, %v559
        %v566 = vadd.f32 %v510, %v560
        %v567 = vadd.f32 %v511, %v561
        %v568 = vadd.f32 %v512, %v562
        %569 = vrot.lane.b32.xlu0 %v426, 15
        %v570 = vpop.permute.xlu0 %569
        %571 = vrot.lane.b32.xlu0 %v428, 15
        %v572 = vpop.permute.xlu0 %571
        %573 = vrot.lane.b32.xlu0 %v430, 15
        %v574 = vpop.permute.xlu0 %573
        %575 = vrot.lane.b32.xlu0 %v427, 15
        %v576 = vpop.permute.xlu0 %575
        %577 = vrot.lane.b32.xlu0 %v429, 15
        %v578 = vpop.permute.xlu0 %577
        %579 = vrot.lane.b32.xlu0 %v431, 15
        %v580 = vpop.permute.xlu0 %579
        %vm581 = vcmp.lt.s32.totalorder %v469, 15
        %v582 = vsel %vm581, %v570, %v576
        %v583 = vsel %vm581, %v572, %v578
        %v584 = vsel %vm581, %v574, %v580
        %v585 = vsel %vm581, %v576, %v570
        %v586 = vsel %vm581, %v578, %v572
        %v587 = vsel %vm581, %v580, %v574
        %s588 = scalar_lea.vmem %s1, 2
        %v589 = vld [vmem:[%s588] ss:$8 sm:$0x3]
        %v591 = vperm.slane %v589, 0
        %v592 = vperm.slane %v589, 1
        %v595 = vmul.f32 %v585, %v591
        %v596 = vmul.f32 %v582, %v592
        %v597 = vmul.f32 %v586, %v591
        %v598 = vmul.f32 %v583, %v592
        %v599 = vmul.f32 %v587, %v591
        %v600 = vmul.f32 %v584, %v592
        %601 = vset.pattern.permute.xlu0 2
        %602 = vperm.xlu0 %601, %v432
        %v603 = vpop.permute.xlu0 %602
        %605 = vset.pattern.permute.xlu0 2
        %606 = vperm.xlu0 %605, %v433
        %v607 = vpop.permute.xlu0 %606
        %609 = vset.pattern.permute.xlu0 2
        %610 = vperm.xlu0 %609, %v434
        %v611 = vpop.permute.xlu0 %610
        %v613 = vmul.f32 %v595, %v603
        %v614 = vmul.f32 %v596, %v603
        %v615 = vmul.f32 %v597, %v607
        %v616 = vmul.f32 %v598, %v607
        %v617 = vmul.f32 %v599, %v611
        %v618 = vmul.f32 %v600, %v611
        %v619 = vadd.f32 %v563, %v613
        %v620 = vadd.f32 %v564, %v614
        %v621 = vadd.f32 %v565, %v615
        %v622 = vadd.f32 %v566, %v616
        %v623 = vadd.f32 %v567, %v617
        %v624 = vadd.f32 %v568, %v618
        %625 = vrot.lane.b32.xlu0 %v426, 1
        %v626 = vpop.permute.xlu0 %625
        %627 = vrot.lane.b32.xlu0 %v428, 1
        %v628 = vpop.permute.xlu0 %627
        %629 = vrot.lane.b32.xlu0 %v430, 1
        %v630 = vpop.permute.xlu0 %629
        %631 = vrot.lane.b32.xlu0 %v427, 1
        %v632 = vpop.permute.xlu0 %631
        %633 = vrot.lane.b32.xlu0 %v429, 1
        %v634 = vpop.permute.xlu0 %633
        %635 = vrot.lane.b32.xlu0 %v431, 1
        %v636 = vpop.permute.xlu0 %635
        %vm637 = vcmp.lt.s32.totalorder %v469, 1
        %v638 = vsel %vm637, %v626, %v632
        %v639 = vsel %vm637, %v628, %v634
        %v640 = vsel %vm637, %v630, %v636
        %v641 = vsel %vm637, %v632, %v626
        %v642 = vsel %vm637, %v634, %v628
        %v643 = vsel %vm637, %v636, %v630
        %s644 = scalar_lea.vmem %s1, 3
        %v645 = vld [vmem:[%s644] ss:$8 sm:$0x3]
        %v647 = vperm.slane %v645, 0
        %v648 = vperm.slane %v645, 1
        %v651 = vmul.f32 %v641, %v647
        %v652 = vmul.f32 %v638, %v648
        %v653 = vmul.f32 %v642, %v647
        %v654 = vmul.f32 %v639, %v648
        %v655 = vmul.f32 %v643, %v647
        %v656 = vmul.f32 %v640, %v648
        %657 = vset.pattern.permute.xlu0 3
        %658 = vperm.xlu0 %657, %v432
        %v659 = vpop.permute.xlu0 %658
        %661 = vset.pattern.permute.xlu0 3
        %662 = vperm.xlu0 %661, %v433
        %v663 = vpop.permute.xlu0 %662
        %665 = vset.pattern.permute.xlu0 3
        %666 = vperm.xlu0 %665, %v434
        %v667 = vpop.permute.xlu0 %666
        %v669 = vmul.f32 %v651, %v659
        %v670 = vmul.f32 %v652, %v659
        %v671 = vmul.f32 %v653, %v663
        %v672 = vmul.f32 %v654, %v663
        %v673 = vmul.f32 %v655, %v667
        %v674 = vmul.f32 %v656, %v667
        %v675 = vadd.f32 %v619, %v669
        %v676 = vadd.f32 %v620, %v670
        %v677 = vadd.f32 %v621, %v671
        %v678 = vadd.f32 %v622, %v672
        %v679 = vadd.f32 %v623, %v673
        %v680 = vadd.f32 %v624, %v674
        %681 = vrot.lane.b32.xlu0 %v426, 127
        %v682 = vpop.permute.xlu0 %681
        %683 = vrot.lane.b32.xlu0 %v428, 127
        %v684 = vpop.permute.xlu0 %683
        %685 = vrot.lane.b32.xlu0 %v430, 127
        %v686 = vpop.permute.xlu0 %685
        %687 = vrot.lane.b32.xlu0 %v427, 127
        %v688 = vpop.permute.xlu0 %687
        %689 = vrot.lane.b32.xlu0 %v429, 127
        %v690 = vpop.permute.xlu0 %689
        %691 = vrot.lane.b32.xlu0 %v431, 127
        %v692 = vpop.permute.xlu0 %691
        %vm693 = vcmp.lt.s32.totalorder %v469, 127
        %v694 = vsel %vm693, %v682, %v688
        %v695 = vsel %vm693, %v684, %v690
        %v696 = vsel %vm693, %v686, %v692
        %v697 = vsel %vm693, %v688, %v682
        %v698 = vsel %vm693, %v690, %v684
        %v699 = vsel %vm693, %v692, %v686
        %s700 = scalar_lea.vmem %s1, 5
        %v701 = vld [vmem:[%s700] ss:$8 sm:$0x3]
        %v703 = vperm.slane %v701, 0
        %v704 = vperm.slane %v701, 1
        %v707 = vmul.f32 %v694, %v703
        %v708 = vmul.f32 %v697, %v704
        %v709 = vmul.f32 %v695, %v703
        %v710 = vmul.f32 %v698, %v704
        %v711 = vmul.f32 %v696, %v703
        %v712 = vmul.f32 %v699, %v704
        %713 = vset.pattern.permute.xlu0 5
        %714 = vperm.xlu0 %713, %v432
        %v715 = vpop.permute.xlu0 %714
        %717 = vset.pattern.permute.xlu0 5
        %718 = vperm.xlu0 %717, %v433
        %v719 = vpop.permute.xlu0 %718
        %721 = vset.pattern.permute.xlu0 5
        %722 = vperm.xlu0 %721, %v434
        %v723 = vpop.permute.xlu0 %722
        %v725 = vmul.f32 %v707, %v715
        %v726 = vmul.f32 %v708, %v715
        %v727 = vmul.f32 %v709, %v719
        %v728 = vmul.f32 %v710, %v719
        %v729 = vmul.f32 %v711, %v723
        %v730 = vmul.f32 %v712, %v723
        %v731 = vadd.f32 %v675, %v725
        %v732 = vadd.f32 %v676, %v726
        %v733 = vadd.f32 %v677, %v727
        %v734 = vadd.f32 %v678, %v728
        %v735 = vadd.f32 %v679, %v729
        %v736 = vadd.f32 %v680, %v730
        %737 = vrot.lane.b32.xlu0 %v426, 113
        %v738 = vpop.permute.xlu0 %737
        %739 = vrot.lane.b32.xlu0 %v428, 113
        %v740 = vpop.permute.xlu0 %739
        %741 = vrot.lane.b32.xlu0 %v430, 113
        %v742 = vpop.permute.xlu0 %741
        %743 = vrot.lane.b32.xlu0 %v427, 113
        %v744 = vpop.permute.xlu0 %743
        %745 = vrot.lane.b32.xlu0 %v429, 113
        %v746 = vpop.permute.xlu0 %745
        %747 = vrot.lane.b32.xlu0 %v431, 113
        %v748 = vpop.permute.xlu0 %747
        %vm749 = vcmp.lt.s32.totalorder %v469, 113
        %v750 = vsel %vm749, %v738, %v744
        %v751 = vsel %vm749, %v740, %v746
        %v752 = vsel %vm749, %v742, %v748
        %v753 = vsel %vm749, %v744, %v738
        %v754 = vsel %vm749, %v746, %v740
        %v755 = vsel %vm749, %v748, %v742
        %s756 = scalar_lea.vmem %s1, 6
        %v757 = vld [vmem:[%s756] ss:$8 sm:$0x3]
        %v759 = vperm.slane %v757, 0
        %v760 = vperm.slane %v757, 1
        %v763 = vmul.f32 %v750, %v759
        %v764 = vmul.f32 %v753, %v760
        %v765 = vmul.f32 %v751, %v759
        %v766 = vmul.f32 %v754, %v760
        %v767 = vmul.f32 %v752, %v759
        %v768 = vmul.f32 %v755, %v760
        %769 = vset.pattern.permute.xlu0 6
        %770 = vperm.xlu0 %769, %v432
        %v771 = vpop.permute.xlu0 %770
        %773 = vset.pattern.permute.xlu0 6
        %774 = vperm.xlu0 %773, %v433
        %v775 = vpop.permute.xlu0 %774
        %777 = vset.pattern.permute.xlu0 6
        %778 = vperm.xlu0 %777, %v434
        %v779 = vpop.permute.xlu0 %778
        %v781 = vmul.f32 %v763, %v771
        %v782 = vmul.f32 %v764, %v771
        %v783 = vmul.f32 %v765, %v775
        %v784 = vmul.f32 %v766, %v775
        %v785 = vmul.f32 %v767, %v779
        %v786 = vmul.f32 %v768, %v779
        %v787 = vadd.f32 %v731, %v781
        %v788 = vadd.f32 %v732, %v782
        %v789 = vadd.f32 %v733, %v783
        %v790 = vadd.f32 %v734, %v784
        %v791 = vadd.f32 %v735, %v785
        %v792 = vadd.f32 %v736, %v786
        %793 = vrot.lane.b32.xlu0 %v426, 112
        %v794 = vpop.permute.xlu0 %793
        %795 = vrot.lane.b32.xlu0 %v428, 112
        %v796 = vpop.permute.xlu0 %795
        %797 = vrot.lane.b32.xlu0 %v430, 112
        %v798 = vpop.permute.xlu0 %797
        %799 = vrot.lane.b32.xlu0 %v427, 112
        %v800 = vpop.permute.xlu0 %799
        %801 = vrot.lane.b32.xlu0 %v429, 112
        %v802 = vpop.permute.xlu0 %801
        %803 = vrot.lane.b32.xlu0 %v431, 112
        %v804 = vpop.permute.xlu0 %803
        %vm805 = vcmp.lt.s32.totalorder %v469, 112
        %v806 = vsel %vm805, %v794, %v800
        %v807 = vsel %vm805, %v796, %v802
        %v808 = vsel %vm805, %v798, %v804
        %v809 = vsel %vm805, %v800, %v794
        %v810 = vsel %vm805, %v802, %v796
        %v811 = vsel %vm805, %v804, %v798
        %s812 = scalar_lea.vmem %s1, 7
        %v813 = vld [vmem:[%s812] ss:$8 sm:$0x3]
        %v815 = vperm.slane %v813, 0
        %v816 = vperm.slane %v813, 1
        %v819 = vmul.f32 %v806, %v815
        %v820 = vmul.f32 %v809, %v816
        %v821 = vmul.f32 %v807, %v815
        %v822 = vmul.f32 %v810, %v816
        %v823 = vmul.f32 %v808, %v815
        %v824 = vmul.f32 %v811, %v816
        %825 = vset.pattern.permute.xlu0 7
        %826 = vperm.xlu0 %825, %v432
        %v827 = vpop.permute.xlu0 %826
        %829 = vset.pattern.permute.xlu0 7
        %830 = vperm.xlu0 %829, %v433
        %v831 = vpop.permute.xlu0 %830
        %833 = vset.pattern.permute.xlu0 7
        %834 = vperm.xlu0 %833, %v434
        %v835 = vpop.permute.xlu0 %834
        %v837 = vmul.f32 %v819, %v827
        %v838 = vmul.f32 %v820, %v827
        %v839 = vmul.f32 %v821, %v831
        %v840 = vmul.f32 %v822, %v831
        %v841 = vmul.f32 %v823, %v835
        %v842 = vmul.f32 %v824, %v835
        %v843 = vadd.f32 %v787, %v837
        %v844 = vadd.f32 %v788, %v838
        %v845 = vadd.f32 %v789, %v839
        %v846 = vadd.f32 %v790, %v840
        %v847 = vadd.f32 %v791, %v841
        %v848 = vadd.f32 %v792, %v842
        %849 = vrot.lane.b32.xlu0 %v426, 111
        %v850 = vpop.permute.xlu0 %849
        %851 = vrot.lane.b32.xlu0 %v428, 111
        %v852 = vpop.permute.xlu0 %851
        %853 = vrot.lane.b32.xlu0 %v430, 111
        %v854 = vpop.permute.xlu0 %853
        %855 = vrot.lane.b32.xlu0 %v427, 111
        %v856 = vpop.permute.xlu0 %855
        %857 = vrot.lane.b32.xlu0 %v429, 111
        %v858 = vpop.permute.xlu0 %857
        %859 = vrot.lane.b32.xlu0 %v431, 111
        %v860 = vpop.permute.xlu0 %859
        %vm861 = vcmp.lt.s32.totalorder %v469, 111
        %v862 = vsel %vm861, %v850, %v856
        %v863 = vsel %vm861, %v852, %v858
        %v864 = vsel %vm861, %v854, %v860
        %v865 = vsel %vm861, %v856, %v850
        %v866 = vsel %vm861, %v858, %v852
        %v867 = vsel %vm861, %v860, %v854
        %s868 = scalar_lea.vmem %s1, 16
        %v869 = vld [vmem:[%s868] ss:$8 sm:$0x3]
        %v871 = vperm.slane %v869, 0
        %v872 = vperm.slane %v869, 1
        %v875 = vmul.f32 %v862, %v871
        %v876 = vmul.f32 %v865, %v872
        %v877 = vmul.f32 %v863, %v871
        %v878 = vmul.f32 %v866, %v872
        %v879 = vmul.f32 %v864, %v871
        %v880 = vmul.f32 %v867, %v872
        %881 = vset.pattern.permute.xlu0 8
        %882 = vperm.xlu0 %881, %v432
        %v883 = vpop.permute.xlu0 %882
        %885 = vset.pattern.permute.xlu0 8
        %886 = vperm.xlu0 %885, %v433
        %v887 = vpop.permute.xlu0 %886
        %889 = vset.pattern.permute.xlu0 8
        %890 = vperm.xlu0 %889, %v434
        %v891 = vpop.permute.xlu0 %890
        %v893 = vmul.f32 %v875, %v883
        %v894 = vmul.f32 %v876, %v883
        %v895 = vmul.f32 %v877, %v887
        %v896 = vmul.f32 %v878, %v887
        %v897 = vmul.f32 %v879, %v891
        %v898 = vmul.f32 %v880, %v891
        %v899 = vadd.f32 %v843, %v893
        %v900 = vadd.f32 %v844, %v894
        %v901 = vadd.f32 %v845, %v895
        %v902 = vadd.f32 %v846, %v896
        %v903 = vadd.f32 %v847, %v897
        %v904 = vadd.f32 %v848, %v898
        %v905 = vld [vmem:[%s5] sm:$0xff]
        %v906 = vld [vmem:[%s5 + $0x8] sm:$0xff]
        %v907 = vld [vmem:[%s5 + $0x10] sm:$0xff]
        %909 = vset.pattern.permute.xlu0 0
        %910 = vperm.xlu0 %909, %v905
        %v911 = vpop.permute.xlu0 %910
        %914 = vset.pattern.permute.xlu0 0
        %915 = vperm.xlu0 %914, %v906
        %v916 = vpop.permute.xlu0 %915
        %919 = vset.pattern.permute.xlu0 0
        %920 = vperm.xlu0 %919, %v907
        %v921 = vpop.permute.xlu0 %920
        %v923 = vadd.f32 %v899, %v911
        %v924 = vadd.f32 %v900, %v911
        %v925 = vadd.f32 %v901, %v916
        %v926 = vadd.f32 %v902, %v916
        %v927 = vadd.f32 %v903, %v921
        %v928 = vadd.f32 %v904, %v921
        %v929 = vmax.f32 %v923, 0.0
        %v930 = vmax.f32 %v924, 0.0
        %v931 = vmax.f32 %v925, 0.0
        %v932 = vmax.f32 %v926, 0.0
        %v933 = vmax.f32 %v927, 0.0
        %v934 = vmax.f32 %v928, 0.0
        %v935 = vmin.f32 %v929, 6.0
        %v936 = vmin.f32 %v930, 6.0
        %v937 = vmin.f32 %v931, 6.0
        %v938 = vmin.f32 %v932, 6.0
        %v939 = vmin.f32 %v933, 6.0
        %v940 = vmin.f32 %v934, 6.0
        %v941 = vpack.c.bf16 %v937, %v935
        %v942 = vpack.c.bf16 %v938, %v936
        %v943 = vpack.c.bf16 %v939, %v939
        %v944 = vpack.c.bf16 %v940, %v940
        %v945 = vld [vmem:[%s6] sm:$0xf]
        %v946 = vld [vmem:[%s7] sm:$0xff]
        %948 = vset.pattern.permute.xlu0 0
        %949 = vperm.xlu0 %948, %v946
        %v950 = vpop.permute.xlu0 %949
        %vm952 = vcmask 195584
        %v954 = vsel %vm952, %v945, 0
        %vm956 = vcmask 1043456
        %v958 = vsel %vm956, %v943, 0
        %v961 = vsel %vm956, %v944, 0
        %963 = vmatpush.bf16.msra.mxu0 0
        %964 = vmatpush.bf16.msra.mxu0 0
        %965 = vmatpush.bf16.msra.mxu0 0
        %966 = vmatpush.bf16.msra.mxu0 0
        %967 = vmatpush.bf16.msra.mxu0 0
        %968 = vmatpush.bf16.msra.mxu0 0
        %969 = vmatpush.bf16.msra.mxu0 %v958
        %970 = vmatpush.bf16.msra.mxu0 %v941
        %971 = vmatmul.bf16.gmra.mxu0 %v954
        %v972 = vpop.f32.mrf.mxu0
        %v973 = vadd.f32 %v950, %v972
        %v974 = vpop.f32.mrf.mxu0
        %975 = vdwg.mxu0
        %976 = vmatpush.bf16.msra.mxu0 0
        %977 = vmatpush.bf16.msra.mxu0 0
        %978 = vmatpush.bf16.msra.mxu0 0
        %979 = vmatpush.bf16.msra.mxu0 0
        %980 = vmatpush.bf16.msra.mxu0 0
        %981 = vmatpush.bf16.msra.mxu0 0
        %982 = vmatpush.bf16.msra.mxu0 %v961
        %983 = vmatpush.bf16.msra.mxu0 %v942
        %984 = vmatmul.bf16.gmra.mxu0 %v954
        %v985 = vpop.f32.mrf.mxu0
        %v986 = vadd.f32 %v950, %v985
        %v987 = vpop.f32.mrf.mxu0
        %988 = vdwg.mxu0
        %v989 = vld [vmem:[%s8] sm:$0xf]
        %v991 = vsel %vm370, %v989, 0
        %993 = vmatpush.bf16.msra.mxu0 0
        %994 = vmatpush.bf16.msra.mxu0 0
        %995 = vmatpush.bf16.msra.mxu0 0
        %996 = vmatpush.bf16.msra.mxu0 0
        %997 = vmatpush.bf16.msra.mxu0 0
        %998 = vmatpush.bf16.msra.mxu0 0
        %999 = vmatpush.bf16.msra.mxu0 0
        %1000 = vmatpush.bf16.msra.mxu0 %v379
        %1001 = vmatmul.bf16.gmra.mxu0 %v991
        %v1002 = vpop.f32.mrf.mxu0
        %v1003 = vadd.f32 0.0, %v1002
        %v1004 = vpop.f32.mrf.mxu0
        %1005 = vdwg.mxu0
        %1006 = vmatpush.bf16.msra.mxu0 0
        %1007 = vmatpush.bf16.msra.mxu0 0
        %1008 = vmatpush.bf16.msra.mxu0 0
        %1009 = vmatpush.bf16.msra.mxu0 0
        %1010 = vmatpush.bf16.msra.mxu0 0
        %1011 = vmatpush.bf16.msra.mxu0 0
        %1012 = vmatpush.bf16.msra.mxu0 0
        %1013 = vmatpush.bf16.msra.mxu0 %v382
        %1014 = vmatmul.bf16.gmra.mxu0 %v991
        %v1015 = vpop.f32.mrf.mxu0
        %v1016 = vadd.f32 0.0, %v1015
        %v1017 = vpop.f32.mrf.mxu0
        %1018 = vdwg.mxu0
        %v1019 = vadd.f32 %v973, %v1003
        %v1020 = vadd.f32 %v986, %v1016
        %1021 = vst [vmem:[%s325] sm:$0xff] %v1019
        %1022 = vst [vmem:[%s325 + $0x8] sm:$0xff] %v1020
        %s1023 = sand.u32 %s225, 1
        %s1024 = scalar_lea.sflag [#allocation3], %s1023
        %s1025 = sand.u32 %s225, 1
        %s1026 = smul.addr %s1025, 16
        %s1027 = scalar_lea.vmem [#allocation2], %s1026
        // Predicated region
        $region57: #{tpu_custom_call.1} parent=55 // pred_check
          %p1028 = pneg %p235
        $region58: #{tpu_custom_call.1} parent=55 // pred_check_branch
          %1030 = sbr.rel (%p1028) target = $region60
        $region59: #{tpu_custom_call.1} parent=55 // pred_region
          %1032 = vsyncadd %s1024, 0
          %s1033 = smul.addr %s23, 2
          %s1034 = smul.addr %s1033, 8
          %s1035 = scalar_lea.hbm %s9, %s1034
          %s1037 = sshll.u32 %s1027, 4
          %s1038 = int_to_ptr.vmem [resolvable:$true] %s1037
          %s1039 = sshll.u32 %s1035, 4
          %s1040 = int_to_ptr.hbm [resolvable:$true] %s1039
          %1042 = dma.vmem_to_hbm [thread:$0]  %s1038, 256, %s1040, %s1024
        $region60: #{tpu_custom_call.1} parent=55 // pred_fallthru
          _
      $region56: #{tpu_custom_call.1} parent=5 // pred_fallthru
        _
      %p1043 = scmp.le.s32.totalorder 2, %s18
      // Predicated region
      $region61: #{tpu_custom_call.1} parent=5 // pred_check
        %p1044 = pneg %p1043
      $region62: #{tpu_custom_call.1} parent=5 // pred_check_branch
        %1046 = sbr.rel (%p1044) target = $region64
      $region63: #{tpu_custom_call.1} parent=5 // pred_region
        %s1047 = ssub.s32 %s18, 2
        // Predicated region
        $region65: #{tpu_custom_call.1} parent=63 // pred_check
          %p1048 = pneg %p241
        $region66: #{tpu_custom_call.1} parent=63 // pred_check_branch
          %1050 = sbr.rel (%p1048) target = $region68
        $region67: #{tpu_custom_call.1} parent=63 // pred_region
          %s1051 = sand.u32 %s226, 1
          %s1052 = scalar_lea.sflag [#allocation3], %s1051
          %s1053 = sand.u32 %s226, 1
          %s1054 = smul.addr %s1053, 16
          %s1055 = scalar_lea.vmem [#allocation2], %s1054
          %1057 = dma.done %s1052, 256
        $region68: #{tpu_custom_call.1} parent=63 // pred_fallthru
          _
      $region64: #{tpu_custom_call.1} parent=5 // pred_fallthru
        _
    $region6: #{tpu_custom_call.1} parent=1 // loop_footer
      %s22 = sadd.s32 1, %s18
    $region7: #{tpu_custom_call.1} parent=1 // loop_footer_branch
      %17 = sbr.rel target = $region3
    $region8: #{tpu_custom_call.1} parent=1 // loop_exit
      _
    %1058 = vsyncpa [#allocation3], 1
    %s1059 = scalar_lea.sflag [#allocation3], 1
    %1060 = vsyncpa %s1059, 1

</llo_original>
